<compile_context>
chip_gen: v7x
topology: tpu7x:2x2x1
jax: 0.10.0
libtpu: 0.0.40
codegen_flags: <defaults>
</compile_context>

<pallas_src>
import functools

import jax
import jax.numpy as jnp
from jax.experimental import pallas as pl
from jax.experimental.pallas import tpu as pltpu


def _pe_dropout_kernel(x_ref, pe_ref, bits_ref, o_ref, *, threshold, scale):
    # x_ref:    (tb, S*D) lane-dense tile of the input slab
    # pe_ref:   (1,  S*D) positional encoding, broadcast over rows (VMEM-resident)
    # bits_ref: (tb, S*D) uint32 random bits
    # o_ref:    (tb, S*D)
    y = x_ref[...] + pe_ref[...]                       # VPU add, broadcast over rows
    keep = bits_ref[...] >= jnp.uint32(threshold)      # integer compare, no f32 cast/mul
    o_ref[...] = jnp.where(keep, y * scale, 0.0).astype(o_ref.dtype)


def _pe_add_kernel(x_ref, pe_ref, o_ref):
    # Eval / inference path (dropout disabled): plain broadcast add.
    o_ref[...] = (x_ref[...] + pe_ref[...]).astype(o_ref.dtype)


def _row_tile(batch, cols, itemsize, budget_bytes=2 << 20):
    """Rows per grid step: biggest divisor of `batch` whose block stays within
    ~budget per buffer (Pallas double-buffers each operand) and satisfies the
    (8, 128) sublane rule (multiple of 8, or the full batch dim)."""
    max_rows = max(1, budget_bytes // max(1, cols * itemsize))
    if batch <= max_rows:
        return batch
    for t in range(max_rows, 0, -1):
        if batch % t == 0 and t % 8 == 0:
            return t
    return batch  # fallback: one big block


def positional_encoding_forward(x, pe, key, *, dropout_p=0.1):
    """x: (B, S, D), pe: (patch_num+1, D). Returns dropout(x + pe[:S]) like the module.

    `key` is a jax.random key used for the dropout mask (training). Pass
    dropout_p=0.0 for eval mode (no mask, exact add).
    """
    B, S, D = x.shape
    assert pe.shape[0] >= S and pe.shape[1] == D
    SD = S * D

    # Lane-dense slabs: last dim S*D (256 for the module config) >> 32 lanes.
    x2 = x.reshape(B, SD)
    pe2 = pe[:S].reshape(1, SD).astype(x.dtype)

    tb = _row_tile(B, SD, x.dtype.itemsize)
    grid = (B // tb,)
    x_spec = pl.BlockSpec((tb, SD), lambda i: (i, 0))
    pe_spec = pl.BlockSpec((1, SD), lambda i: (0, 0))     # same block every step -> resident
    out_spec = pl.BlockSpec((tb, SD), lambda i: (i, 0))
    cparams = pltpu.CompilerParams(dimension_semantics=("parallel",))

    if dropout_p > 0.0:
        # Random bits generated once outside the kernel (deterministic in `key`);
        # the threshold compare inside the kernel gives keep probability 1 - p.
        bits = jax.random.bits(key, (B, SD), dtype=jnp.uint32)
        threshold = min(int(round(float(dropout_p) * 2.0**32)), 2**32 - 1)
        kernel = functools.partial(
            _pe_dropout_kernel,
            threshold=threshold,
            scale=1.0 / (1.0 - float(dropout_p)),
        )
        out2 = pl.pallas_call(
            kernel,
            out_shape=jax.ShapeDtypeStruct((B, SD), x.dtype),
            grid=grid,
            in_specs=[x_spec, pe_spec, pl.BlockSpec((tb, SD), lambda i: (i, 0))],
            out_specs=out_spec,
            compiler_params=cparams,
        )(x2, pe2, bits)
    else:
        out2 = pl.pallas_call(
            _pe_add_kernel,
            out_shape=jax.ShapeDtypeStruct((B, SD), x.dtype),
            grid=grid,
            in_specs=[x_spec, pe_spec],
            out_specs=out_spec,
            compiler_params=cparams,
        )(x2, pe2)

    return out2.reshape(B, S, D)


if __name__ == "__main__":
    # Module config: patch_num=7, d_model=32, dropout=0.1  ->  x: (B, patch_num+1, d_model)
    patch_num, d_model, dropout_p = 7, 32, 0.1
    B, S = 2, patch_num + 1

    key = jax.random.PRNGKey(0)
    kx, kpe, kdrop = jax.random.split(key, 3)
    x = jax.random.normal(kx, (B, S, d_model), dtype=jnp.float32)
    # nn.Parameter(torch.rand(...)) -> U[0,1) init
    pe = jax.random.uniform(kpe, (patch_num + 1, d_model), dtype=jnp.float32)

    # Training-mode forward (dropout applied in-kernel).
    out = positional_encoding_forward(x, pe, kdrop, dropout_p=dropout_p)
    out = jax.block_until_ready(out)

    assert out.shape == (B, S, d_model) and out.dtype == jnp.float32
    expected = (x + pe[:S][None]) / (1.0 - dropout_p)
    ok_mask = (jnp.abs(out) < 1e-6) | (jnp.abs(out - expected) < 1e-4)
    assert bool(jnp.all(ok_mask)), "dropout output mismatch"
    drop_frac = float(jnp.mean((jnp.abs(out) < 1e-6) & (jnp.abs(expected) > 1e-3)))
    assert 0.0 <= drop_frac <= 0.35, f"unexpected drop fraction {drop_frac}"

    # Eval-mode forward (dropout_p=0): exact broadcast add.
    out_eval = positional_encoding_forward(x, pe, kdrop, dropout_p=0.0)
    out_eval = jax.block_until_ready(out_eval)
    assert bool(jnp.allclose(out_eval, x + pe[:S][None], atol=1e-6)), "eval add mismatch"

    print("KERNEL_OK")
</pallas_src>

<mosaic_0001>
module attributes {stable_mosaic.version = 11 : i64} {
  func.func @_pe_dropout_kernel(%arg0: i32, %arg1: memref<2x256xf32, #tpu.memory_space<vmem>>, %arg2: memref<1x256xf32, #tpu.memory_space<vmem>>, %arg3: memref<2x256xi32, #tpu.memory_space<vmem>>, %arg4: memref<2x256xf32, #tpu.memory_space<vmem>>) attributes {dimension_semantics = [#tpu.dimension_semantics<parallel>], iteration_bounds = array<i64: 1>, scalar_prefetch = 0 : i64, scratch_operands = 0 : i64, tpu.core_type = #tpu.core_type<tc>, window_params = [{transform_indices = @transform_0, window_bounds = array<i64: 2, 256>}, {pipeline_mode = #tpu.pipeline_mode<synchronous>, transform_indices = @transform_1, window_bounds = array<i64: 1, 256>}, {transform_indices = @transform_2, window_bounds = array<i64: 2, 256>}, {transform_indices = @transform_3, window_bounds = array<i64: 2, 256>}]} {
    %c0 = arith.constant 0 : index
    %c0_0 = arith.constant 0 : index
    %0 = vector.load %arg1[%c0, %c0_0] : memref<2x256xf32, #tpu.memory_space<vmem>>, vector<2x256xf32>
    %c0_1 = arith.constant 0 : index
    %c0_2 = arith.constant 0 : index
    %1 = vector.load %arg2[%c0_1, %c0_2] : memref<1x256xf32, #tpu.memory_space<vmem>>, vector<1x256xf32>
    %2 = vector.broadcast %1 : vector<1x256xf32> to vector<2x256xf32>
    %3 = arith.addf %0, %2 : vector<2x256xf32>
    %c0_3 = arith.constant 0 : index
    %c0_4 = arith.constant 0 : index
    %4 = vector.load %arg3[%c0_3, %c0_4] : memref<2x256xi32, #tpu.memory_space<vmem>>, vector<2x256xi32>
    %c429496730_i32 = arith.constant 429496730 : i32
    %5 = vector.broadcast %c429496730_i32 : i32 to vector<2x256xi32>
    %6 = arith.cmpi uge, %4, %5 : vector<2x256xi32>
    %cst = arith.constant 1.11111116 : f32
    %7 = vector.broadcast %cst : f32 to vector<2x256xf32>
    %8 = arith.mulf %3, %7 : vector<2x256xf32>
    %cst_5 = arith.constant 0.000000e+00 : f32
    %9 = vector.broadcast %cst_5 : f32 to vector<2x256xf32>
    %10 = arith.select %6, %8, %9 : vector<2x256xi1>, vector<2x256xf32>
    %c0_6 = arith.constant 0 : index
    %c0_7 = arith.constant 0 : index
    %11 = vector.load %arg4[%c0_6, %c0_7] : memref<2x256xf32, #tpu.memory_space<vmem>>, vector<2x256xf32>
    tpu.vector_store %arg4[%c0_6, %c0_7], %10 {strides = array<i32>} : memref<2x256xf32, #tpu.memory_space<vmem>>, vector<2x256xf32>,
    return
  }
  func.func @transform_0(%arg0: i32) -> (i32, i32) {
    %c0_i32 = arith.constant 0 : i32
    %c0_i32_0 = arith.constant 0 : i32
    return %arg0, %c0_i32 : i32, i32
  }
  func.func @transform_1(%arg0: i32) -> (i32, i32) {
    %c0_i32 = arith.constant 0 : i32
    %c0_i32_0 = arith.constant 0 : i32
    %c0_i32_1 = arith.constant 0 : i32
    return %c0_i32, %c0_i32_0 : i32, i32
  }
  func.func @transform_2(%arg0: i32) -> (i32, i32) {
    %c0_i32 = arith.constant 0 : i32
    %c0_i32_0 = arith.constant 0 : i32
    return %arg0, %c0_i32 : i32, i32
  }
  func.func @transform_3(%arg0: i32) -> (i32, i32) {
    %c0_i32 = arith.constant 0 : i32
    %c0_i32_0 = arith.constant 0 : i32
    return %arg0, %c0_i32 : i32, i32
  }
}

</mosaic_0001>

<llo_original>
// kernel: tpu_custom_call.1
$region0: #{tpu_custom_call.1}
  #allocation0 [shape = 'u32[]', space=smem, size = 0x4, offset = 0x4, fixed_abs, tag = 'smem constant byte address 0x4 - core index']
  #allocation1 [shape = 'u32[144,128]{1,0:T(1,128)}', space=vmem, size = 0x12000, scoped, tag = 'internal scratch']
  %s0 = inlined_call_operand.hbm [shape: f32[2,256], index: 0, kind: input, shape index: {}]
  %s1 = inlined_call_operand.vmem [shape: f32[1,256], index: 1, kind: input, shape index: {}]
  %s2 = inlined_call_operand.vmem [shape: u32[2,256], index: 2, kind: input, shape index: {}]
  %s3 = inlined_call_operand.hbm [shape: f32[2,256], index: 3, kind: output, shape index: {}]
  %s4 = sld [smem:[#allocation0]]
  $region26: #{tpu_custom_call.1} parent=0
    _
  %s6 = ssub.s32 1, %s4
  %s7 = scalar_select 0, %s6, %s4
  $region1: #{tpu_custom_call.1} parent=0
    #allocation2 [shape = 'u8[2048]{0}', space=vmem, size = 0x800, scoped, tag = 'input window, operand 0, single buffered']
    #allocation3 [shape = 's32[1]{0}', space=sflag, size = 0x4, scoped, tag = 'scoped memory for tpu_custom_call.1']
    #allocation4 [shape = 's32[1]{0}', space=sflag, size = 0x4, scoped, tag = 'scoped memory for tpu_custom_call.1']
    #allocation5 [shape = 'u8[2048]{0}', space=vmem, size = 0x800, scoped, tag = 'output window, operand 0, single buffered']
    %8 = vsyncpa [#allocation3], 0
    %9 = vsyncpa [#allocation4], 0
    // Predicated region
    $region2: #{tpu_custom_call.1} parent=1 // pred_check
      _
    $region3: #{tpu_custom_call.1} parent=1 // pred_check_branch
      %11 = sbr.rel (0) target = $region5
    $region4: #{tpu_custom_call.1} parent=1 // pred_region
      %s13 = ssub.s32 64, 64
      %14 = vsyncadd [#allocation3], %s13
      %s16 = sshll.u32 [#allocation2], 4
      %s17 = int_to_ptr.vmem [resolvable:$true] %s16
      %19 = dma.hbm_to_vmem [thread:$0]  %s0, 64, %s17, [#allocation3]
    $region5: #{tpu_custom_call.1} parent=1 // pred_fallthru
      _
    // Predicated region
    $region6: #{tpu_custom_call.1} parent=1 // pred_check
      _
    $region7: #{tpu_custom_call.1} parent=1 // pred_check_branch
      %21 = sbr.rel (0) target = $region9
    $region8: #{tpu_custom_call.1} parent=1 // pred_region
      _
    $region9: #{tpu_custom_call.1} parent=1 // pred_fallthru
      _
    // Predicated region
    $region10: #{tpu_custom_call.1} parent=1 // pred_check
      _
    $region11: #{tpu_custom_call.1} parent=1 // pred_check_branch
      %23 = sbr.rel (0) target = $region13
    $region12: #{tpu_custom_call.1} parent=1 // pred_region
      _
    $region13: #{tpu_custom_call.1} parent=1 // pred_fallthru
      _
    // Predicated region
    $region14: #{tpu_custom_call.1} parent=1 // pred_check
      _
    $region15: #{tpu_custom_call.1} parent=1 // pred_check_branch
      %25 = sbr.rel (0) target = $region17
    $region16: #{tpu_custom_call.1} parent=1 // pred_region
      %26 = dma.done [#allocation3], 64
    $region17: #{tpu_custom_call.1} parent=1 // pred_fallthru
      _
    %v27 = vld [vmem:[#allocation2] sm:$0xf]
    %v28 = vld [vmem:[%s1] sm:$0x3]
    %v30 = vlaneseq
    %v31 = vshrl.u32 %v30, 7
    %v32 = vsub.s32 0, %v31
    %v33 = vrot.slane %v28, %v32
    %v34 = vlaneseq
    %v35 = vshrl.u32 %v34, 7
    %v36 = vsub.s32 1, %v35
    %v37 = vrot.slane %v28, %v36
    %v38 = vcombine.low %v33, %v37
    %v40 = vunpack.c.l.s4 1983009808
    %v41 = vunpack.c.0.s8 %v40
    %v42 = vlaneseq
    %v43 = vshrl.u32 %v42, 7
    %v44 = vsub.s32 %v41, %v43
    %v45 = vrot.slane %v38, %v44
    %v47 = vadd.f32 %v27, %v45
    %v48 = vld [vmem:[%s2] sm:$0xf]
    %vm49 = vcmp.ge.u32.totalorder %v48, 429496730
    %v50 = vmul.f32 %v47, 1.1111112
    %v51 = vsel %vm49, %v50, 0.0
    %52 = vst [vmem:[#allocation5] sm:$0xf] %v51
    // Predicated region
    $region18: #{tpu_custom_call.1} parent=1 // pred_check
      _
    $region19: #{tpu_custom_call.1} parent=1 // pred_check_branch
      %54 = sbr.rel (0) target = $region21
    $region20: #{tpu_custom_call.1} parent=1 // pred_region
      %s56 = ssub.s32 64, 64
      %57 = vsyncadd [#allocation4], %s56
      %s59 = sshll.u32 [#allocation5], 4
      %s60 = int_to_ptr.vmem [resolvable:$true] %s59
      %62 = dma.vmem_to_hbm [thread:$0]  %s60, 64, %s3, [#allocation4]
    $region21: #{tpu_custom_call.1} parent=1 // pred_fallthru
      _
    // Predicated region
    $region22: #{tpu_custom_call.1} parent=1 // pred_check
      _
    $region23: #{tpu_custom_call.1} parent=1 // pred_check_branch
      %64 = sbr.rel (0) target = $region25
    $region24: #{tpu_custom_call.1} parent=1 // pred_region
      %65 = dma.done [#allocation4], 64
    $region25: #{tpu_custom_call.1} parent=1 // pred_fallthru
      _
    %66 = vsyncpa [#allocation3], 1
    %67 = vsyncpa [#allocation4], 1

</llo_original>
